<compile_context>
chip_gen: v7x
topology: tpu7x:2x2x1
jax: 0.10.0
libtpu: 0.0.40
codegen_flags: <defaults>
</compile_context>

<pallas_src>
import functools

import jax
import jax.numpy as jnp
from jax.experimental import pallas as pl
from jax.experimental.pallas import tpu as pltpu


def _ff_kernel(x_ref, w_ref, b_ref, out_ref, *, n_layers, n_features, n_output):
    """Fused forward: [Linear -> ReLU] * L -> log_softmax(dim=1).

    x_ref  : (B, n_features)     f32   raw (unpadded) input features
    w_ref  : (L, D_pad, D_pad)   bf16  zero-padded (in, out) weight slab
    b_ref  : (L, 1, D_pad)       f32   zero-padded bias slab
    out_ref: (B, n_output)       f32   log-probs (no padded columns stored)
    """
    h = x_ref[...]                                           # (B, n_features) f32
    for l in range(n_layers):                                # statically unrolled (L small)
        if l == 0:
            # First layer: static row-slice of the padded slab so the
            # contraction dim matches the unpadded input width.
            w = w_ref[0, :n_features, :]                     # (n_features, D_pad) bf16
        else:
            w = w_ref[l]                                     # (D_pad, D_pad) bf16
        b = b_ref[l]                                         # (1, D_pad) f32
        # bf16 operands on the MXU, f32 accumulation; element-wise ops in f32
        # (v5e's VPU/EUP have no bf16).
        h = jnp.dot(h.astype(jnp.bfloat16), w,
                    preferred_element_type=jnp.float32) + b
        h = jnp.maximum(h, 0.0)      # ReLU after EVERY layer (matches the spec)

    # log_softmax along dim=1 (features), numerically stable.
    # Padded columns are exactly 0 after ReLU; mask them to -inf so they
    # contribute exp(-inf) = 0 to the denominator.
    col = jax.lax.broadcasted_iota(jnp.int32, h.shape, 1)
    h = jnp.where(col < n_output, h, -jnp.inf)
    m = jnp.max(h, axis=1, keepdims=True)
    shifted = h - m
    lse = jnp.log(jnp.sum(jnp.exp(shifted), axis=1, keepdims=True))
    # Store only the real logit columns (masked vst of 16 lanes is trivial
    # next to an extra wrapper-side slice HLO).
    out_ref[...] = (shifted - lse)[:, :n_output]


def pack_params(weights, biases, d_pad=None):
    """One-time packing of PyTorch-convention params into two padded slabs.

    weights[l]: (out_l, in_l); biases[l]: (out_l,).
    Returns (w_slab bf16 (L, d_pad, d_pad), b_slab f32 (L, 1, d_pad), layer_dims).
    Call at model-init time, NOT inside the per-forward path.
    """
    dims = [int(weights[0].shape[1])] + [int(w.shape[0]) for w in weights]
    if d_pad is None:
        d_pad = max(128, ((max(dims) + 127) // 128) * 128)   # lane-dense width
    n_layers = len(weights)
    w_slab = jnp.zeros((n_layers, d_pad, d_pad), jnp.float32)
    b_slab = jnp.zeros((n_layers, 1, d_pad), jnp.float32)
    for l, (w, b) in enumerate(zip(weights, biases)):
        d_in, d_out = int(w.shape[1]), int(w.shape[0])
        w_slab = w_slab.at[l, :d_in, :d_out].set(jnp.asarray(w, jnp.float32).T)
        b_slab = b_slab.at[l, 0, :d_out].set(jnp.asarray(b, jnp.float32))
    return w_slab.astype(jnp.bfloat16), b_slab, tuple(dims)


@functools.partial(jax.jit, static_argnames=("layer_dims",))
def ff_model_forward(x, w_slab, b_slab, *, layer_dims):
    """x: (batch, n_features) f32. Returns (batch, n_output) f32 log-probs."""
    batch, n_features = x.shape
    n_layers = len(layer_dims) - 1
    L, _, d_pad = w_slab.shape
    n_output = layer_dims[-1]
    if x.dtype != jnp.float32:
        x = x.astype(jnp.float32)

    kernel = functools.partial(_ff_kernel, n_layers=n_layers,
                               n_features=n_features, n_output=n_output)

    flops = 2 * batch * sum(a * b for a, b in zip(layer_dims[:-1], layer_dims[1:]))
    bytes_accessed = (x.size * 4 + w_slab.size * 2 + b_slab.size * 4
                      + batch * n_output * 4)
    cost = pl.CostEstimate(flops=flops,
                           transcendentals=batch * (d_pad + 1),
                           bytes_accessed=bytes_accessed)
    out_shape = jax.ShapeDtypeStruct((batch, n_output), jnp.float32)

    TB = 128
    if batch >= 2 * TB and batch % TB == 0:
        # Large-batch / v7x megacore path: parallel batch grid; weights and
        # biases stay resident (same block every grid step).
        return pl.pallas_call(
            kernel,
            out_shape=out_shape,
            grid=(batch // TB,),
            in_specs=[
                pl.BlockSpec((TB, n_features), lambda i: (i, 0)),
                pl.BlockSpec((L, d_pad, d_pad), lambda i: (0, 0, 0)),
                pl.BlockSpec((L, 1, d_pad), lambda i: (0, 0, 0)),
            ],
            out_specs=pl.BlockSpec((TB, n_output), lambda i: (i, 0)),
            compiler_params=pltpu.CompilerParams(
                dimension_semantics=("parallel",)),
            cost_estimate=cost,
        )(x, w_slab, b_slab)

    # Small-batch path: no grid (everything fits in one VMEM block; a grid
    # would just be a sequential loop = pure overhead).
    vmem = pl.BlockSpec(memory_space=pltpu.MemorySpace.VMEM)
    return pl.pallas_call(
        kernel,
        out_shape=out_shape,
        in_specs=[vmem, vmem, vmem],
        out_specs=vmem,
        cost_estimate=cost,
    )(x, w_slab, b_slab)


def init_linear_params(key, n_in, n_out):
    """Deterministic init mirroring torch.nn.Linear: U(-1/sqrt(in), 1/sqrt(in))."""
    kw, kb = jax.random.split(key)
    bound = 1.0 / jnp.sqrt(jnp.float32(n_in))
    w = jax.random.uniform(kw, (n_out, n_in), jnp.float32, -bound, bound)
    b = jax.random.uniform(kb, (n_out,), jnp.float32, -bound, bound)
    return w, b


def reference_forward(x, weights, biases, *, bf16_matmul):
    """Pure-JAX reference. With bf16_matmul=True it mirrors the kernel's
    bf16-operand / f32-accumulate matmuls; with False it is full f32."""
    h = x.astype(jnp.float32)
    for w, b in zip(weights, biases):
        wt = jnp.asarray(w, jnp.float32).T
        if bf16_matmul:
            z = jnp.dot(h.astype(jnp.bfloat16), wt.astype(jnp.bfloat16),
                        preferred_element_type=jnp.float32)
        else:
            z = jnp.dot(h, wt, preferred_element_type=jnp.float32)
        h = jnp.maximum(z + jnp.asarray(b, jnp.float32), 0.0)
    return jax.nn.log_softmax(h, axis=1)


if __name__ == "__main__":
    # FFModel(n_features=32, n_output=16, n_layers=[64, 64], batch_size=8)
    n_features = 32
    hidden = [64, 64]
    n_output = 16
    batch = 8

    dims = [n_features] + hidden + [n_output]

    key = jax.random.PRNGKey(0)
    key, xkey = jax.random.split(key)
    x = jax.random.normal(xkey, (batch, n_features), jnp.float32)

    weights, biases = [], []
    for n_in, n_out in zip(dims[:-1], dims[1:]):
        key, lkey = jax.random.split(key)
        w, b = init_linear_params(lkey, n_in, n_out)
        weights.append(w)
        biases.append(b)

    # One-time packing (hoisted out of the per-call path).
    w_slab, b_slab, layer_dims = pack_params(weights, biases)

    # --- Small-batch (no-grid) path ---
    out = ff_model_forward(x, w_slab, b_slab, layer_dims=layer_dims)
    out = jax.block_until_ready(out)
    assert out.shape == (batch, n_output)
    assert bool(jnp.all(jnp.isfinite(out))), "non-finite log-probs"

    # Strict check against a reference that uses the same bf16-operand matmuls.
    ref_bf16 = reference_forward(x, weights, biases, bf16_matmul=True)
    assert jnp.allclose(out, ref_bf16, atol=1e-3, rtol=1e-3), "mismatch vs bf16 ref"

    # Looser semantic check against the full-f32 reference.
    ref_f32 = reference_forward(x, weights, biases, bf16_matmul=False)
    assert jnp.allclose(out, ref_f32, atol=5e-2, rtol=5e-2), "mismatch vs f32 ref"

    # --- Large-batch (parallel batch-grid / v7x megacore) path ---
    big_batch = 256
    key, xkey2 = jax.random.split(key)
    x_big = jax.random.normal(xkey2, (big_batch, n_features), jnp.float32)
    out_big = ff_model_forward(x_big, w_slab, b_slab, layer_dims=layer_dims)
    out_big = jax.block_until_ready(out_big)
    assert out_big.shape == (big_batch, n_output)
    ref_big = reference_forward(x_big, weights, biases, bf16_matmul=True)
    assert jnp.allclose(out_big, ref_big, atol=1e-3, rtol=1e-3), "grid-path mismatch"

    print("KERNEL_OK")
</pallas_src>

<mosaic_0001>
module attributes {stable_mosaic.version = 11 : i64} {
  func.func @_ff_kernel(%arg0: memref<8x32xf32, #tpu.memory_space<vmem>>, %arg1: memref<3x128x128xbf16, #tpu.memory_space<vmem>>, %arg2: memref<3x1x128xf32, #tpu.memory_space<vmem>>, %arg3: memref<8x16xf32, #tpu.memory_space<vmem>>) attributes {dimension_semantics = [], scalar_prefetch = 0 : i64, scratch_operands = 0 : i64, tpu.core_type = #tpu.core_type<tc>} {
    %c0 = arith.constant 0 : index
    %c0_0 = arith.constant 0 : index
    %0 = vector.load %arg0[%c0, %c0_0] : memref<8x32xf32, #tpu.memory_space<vmem>>, vector<8x32xf32>
    %c0_1 = arith.constant 0 : index
    %c0_2 = arith.constant 0 : index
    %c0_3 = arith.constant 0 : index
    %1 = vector.load %arg1[%c0_1, %c0_2, %c0_3] : memref<3x128x128xbf16, #tpu.memory_space<vmem>>, vector<1x32x128xbf16>
    %2 = vector.shape_cast %1 : vector<1x32x128xbf16> to vector<32x128xbf16>
    %c0_4 = arith.constant 0 : index
    %c0_5 = arith.constant 0 : index
    %c0_6 = arith.constant 0 : index
    %3 = vector.load %arg2[%c0_4, %c0_5, %c0_6] : memref<3x1x128xf32, #tpu.memory_space<vmem>>, vector<1x1x128xf32>
    %4 = vector.shape_cast %3 : vector<1x1x128xf32> to vector<1x128xf32>
    %5 = arith.truncf %0 : vector<8x32xf32> to vector<8x32xbf16>
    %cst = arith.constant dense<0.000000e+00> : vector<8x128xf32>
    %6 = tpu.matmul %5, %2, %cst {dimension_numbers = #tpu.dot_dimension_numbers<[1], [0], [0], [1], [0, 0, 1, 1], [], []>} : vector<8x32xbf16>, vector<32x128xbf16>, vector<8x128xf32> -> vector<8x128xf32>
    %7 = vector.broadcast %4 : vector<1x128xf32> to vector<8x128xf32>
    %8 = arith.addf %6, %7 : vector<8x128xf32>
    %cst_7 = arith.constant 0.000000e+00 : f32
    %9 = vector.broadcast %cst_7 : f32 to vector<8x128xf32>
    %10 = arith.maximumf %8, %9 : vector<8x128xf32>
    %c1 = arith.constant 1 : index
    %c0_8 = arith.constant 0 : index
    %c0_9 = arith.constant 0 : index
    %11 = vector.load %arg1[%c1, %c0_8, %c0_9] : memref<3x128x128xbf16, #tpu.memory_space<vmem>>, vector<1x128x128xbf16>
    %12 = vector.shape_cast %11 : vector<1x128x128xbf16> to vector<128x128xbf16>
    %c1_10 = arith.constant 1 : index
    %c0_11 = arith.constant 0 : index
    %c0_12 = arith.constant 0 : index
    %13 = vector.load %arg2[%c1_10, %c0_11, %c0_12] : memref<3x1x128xf32, #tpu.memory_space<vmem>>, vector<1x1x128xf32>
    %14 = vector.shape_cast %13 : vector<1x1x128xf32> to vector<1x128xf32>
    %15 = arith.truncf %10 : vector<8x128xf32> to vector<8x128xbf16>
    %cst_13 = arith.constant dense<0.000000e+00> : vector<8x128xf32>
    %16 = tpu.matmul %15, %12, %cst_13 {dimension_numbers = #tpu.dot_dimension_numbers<[1], [0], [0], [1], [0, 0, 1, 1], [], []>} : vector<8x128xbf16>, vector<128x128xbf16>, vector<8x128xf32> -> vector<8x128xf32>
    %17 = vector.broadcast %14 : vector<1x128xf32> to vector<8x128xf32>
    %18 = arith.addf %16, %17 : vector<8x128xf32>
    %cst_14 = arith.constant 0.000000e+00 : f32
    %19 = vector.broadcast %cst_14 : f32 to vector<8x128xf32>
    %20 = arith.maximumf %18, %19 : vector<8x128xf32>
    %c2 = arith.constant 2 : index
    %c0_15 = arith.constant 0 : index
    %c0_16 = arith.constant 0 : index
    %21 = vector.load %arg1[%c2, %c0_15, %c0_16] : memref<3x128x128xbf16, #tpu.memory_space<vmem>>, vector<1x128x128xbf16>
    %22 = vector.shape_cast %21 : vector<1x128x128xbf16> to vector<128x128xbf16>
    %c2_17 = arith.constant 2 : index
    %c0_18 = arith.constant 0 : index
    %c0_19 = arith.constant 0 : index
    %23 = vector.load %arg2[%c2_17, %c0_18, %c0_19] : memref<3x1x128xf32, #tpu.memory_space<vmem>>, vector<1x1x128xf32>
    %24 = vector.shape_cast %23 : vector<1x1x128xf32> to vector<1x128xf32>
    %25 = arith.truncf %20 : vector<8x128xf32> to vector<8x128xbf16>
    %cst_20 = arith.constant dense<0.000000e+00> : vector<8x128xf32>
    %26 = tpu.matmul %25, %22, %cst_20 {dimension_numbers = #tpu.dot_dimension_numbers<[1], [0], [0], [1], [0, 0, 1, 1], [], []>} : vector<8x128xbf16>, vector<128x128xbf16>, vector<8x128xf32> -> vector<8x128xf32>
    %27 = vector.broadcast %24 : vector<1x128xf32> to vector<8x128xf32>
    %28 = arith.addf %26, %27 : vector<8x128xf32>
    %cst_21 = arith.constant 0.000000e+00 : f32
    %29 = vector.broadcast %cst_21 : f32 to vector<8x128xf32>
    %30 = arith.maximumf %28, %29 : vector<8x128xf32>
    %31 = tpu.iota {dimensions = array<i32: 1>} : vector<8x128xi32>
    %c16_i32 = arith.constant 16 : i32
    %32 = vector.broadcast %c16_i32 : i32 to vector<8x128xi32>
    %33 = arith.cmpi slt, %31, %32 : vector<8x128xi32>
    %cst_22 = arith.constant 0xFF800000 : f32
    %34 = vector.broadcast %cst_22 : f32 to vector<8x128xf32>
    %35 = arith.select %33, %30, %34 : vector<8x128xi1>, vector<8x128xf32>
    %cst_23 = arith.constant dense<0xFF800000> : vector<8xf32>
    %36 = vector.multi_reduction <maximumf>, %35, %cst_23 [1] : vector<8x128xf32> to vector<8xf32>
    %37 = vector.shape_cast %36 : vector<8xf32> to vector<8x1xf32>
    %38 = vector.broadcast %37 : vector<8x1xf32> to vector<8x128xf32>
    %39 = arith.subf %35, %38 : vector<8x128xf32>
    %40 = math.exp %39 : vector<8x128xf32>
    %cst_24 = arith.constant dense<0.000000e+00> : vector<8xf32>
    %41 = vector.multi_reduction <add>, %40, %cst_24 [1] : vector<8x128xf32> to vector<8xf32>
    %42 = vector.shape_cast %41 : vector<8xf32> to vector<8x1xf32>
    %43 = math.log %42 : vector<8x1xf32>
    %44 = vector.broadcast %43 : vector<8x1xf32> to vector<8x128xf32>
    %45 = arith.subf %39, %44 : vector<8x128xf32>
    %46 = vector.extract_strided_slice %45 {offsets = [0, 0], sizes = [8, 16], strides = [1, 1]} : vector<8x128xf32> to vector<8x16xf32>
    %c0_25 = arith.constant 0 : index
    %c0_26 = arith.constant 0 : index
    %47 = vector.load %arg3[%c0_25, %c0_26] : memref<8x16xf32, #tpu.memory_space<vmem>>, vector<8x16xf32>
    tpu.vector_store %arg3[%c0_25, %c0_26], %46 {strides = array<i32>} : memref<8x16xf32, #tpu.memory_space<vmem>>, vector<8x16xf32>,
    return
  }
}

</mosaic_0001>

<llo_original>
// kernel: ff_model_forward.1
$region0: #{ff_model_forward.1}
  #allocation0 [shape = 'u32[]', space=smem, size = 0x4, offset = 0x4, fixed_abs, tag = 'smem constant byte address 0x4 - core index']
  #allocation1 [shape = 'u32[144,128]{1,0:T(1,128)}', space=vmem, size = 0x12000, scoped, tag = 'internal scratch']
  %s0 = inlined_call_operand.hbm [shape: f32[8,32], index: 0, kind: input, shape index: {}]
  %s1 = inlined_call_operand.hbm [shape: bf16[3,128,128], index: 1, kind: input, shape index: {}]
  %s2 = inlined_call_operand.vmem [shape: f32[3,1,128], index: 2, kind: input, shape index: {}]
  %s3 = inlined_call_operand.hbm [shape: f32[8,16], index: 3, kind: output, shape index: {}]
  %s4 = sld [smem:[#allocation0]]
  $region30: #{ff_model_forward.1} parent=0
    _
  %s6 = ssub.s32 1, %s4
  %s7 = scalar_select 0, %s6, %s4
  $region1: #{ff_model_forward.1} parent=0
    #allocation2 [shape = 'u8[4096]{0}', space=vmem, size = 0x1000, scoped, tag = 'input window, operand 0, single buffered']
    #allocation3 [shape = 's32[1]{0}', space=sflag, size = 0x4, scoped, tag = 'scoped memory for ff_model_forward.1']
    #allocation4 [shape = 's32[1]{0}', space=sflag, size = 0x4, scoped, tag = 'scoped memory for ff_model_forward.1']
    #allocation5 [shape = 'u8[98304]{0}', space=vmem, size = 0x18000, scoped, tag = 'input window, operand 1, single buffered']
    #allocation6 [shape = 's32[1]{0}', space=sflag, size = 0x4, scoped, tag = 'scoped memory for ff_model_forward.1']
    #allocation7 [shape = 'u8[4096]{0}', space=vmem, size = 0x1000, scoped, tag = 'output window, operand 0, single buffered']
    %8 = vsyncpa [#allocation3], 0
    %9 = vsyncpa [#allocation6], 0
    %10 = vsyncpa [#allocation4], 0
    // Predicated region
    $region2: #{ff_model_forward.1} parent=1 // pred_check
      _
    $region3: #{ff_model_forward.1} parent=1 // pred_check_branch
      %12 = sbr.rel (0) target = $region5
    $region4: #{ff_model_forward.1} parent=1 // pred_region
      %s14 = ssub.s32 128, 128
      %15 = vsyncadd [#allocation3], %s14
      %s17 = sshll.u32 [#allocation2], 4
      %s18 = int_to_ptr.vmem [resolvable:$true] %s17
      %20 = dma.hbm_to_vmem [thread:$0]  %s0, 128, %s18, [#allocation3]
    $region5: #{ff_model_forward.1} parent=1 // pred_fallthru
      _
    // Predicated region
    $region6: #{ff_model_forward.1} parent=1 // pred_check
      _
    $region7: #{ff_model_forward.1} parent=1 // pred_check_branch
      %22 = sbr.rel (0) target = $region9
    $region8: #{ff_model_forward.1} parent=1 // pred_region
      %s24 = ssub.s32 3072, 3072
      %25 = vsyncadd [#allocation6], %s24
      %s26 = sshll.u32 [#allocation5], 4
      %s27 = int_to_ptr.vmem [resolvable:$true] %s26
      %32 = dma.hbm_to_vmem [thread:$0]  %s1, 3072, %s27, [#allocation6], 64, 64, 4
    $region9: #{ff_model_forward.1} parent=1 // pred_fallthru
      _
    // Predicated region
    $region10: #{ff_model_forward.1} parent=1 // pred_check
      _
    $region11: #{ff_model_forward.1} parent=1 // pred_check_branch
      %34 = sbr.rel (0) target = $region13
    $region12: #{ff_model_forward.1} parent=1 // pred_region
      _
    $region13: #{ff_model_forward.1} parent=1 // pred_fallthru
      _
    // Predicated region
    $region14: #{ff_model_forward.1} parent=1 // pred_check
      _
    $region15: #{ff_model_forward.1} parent=1 // pred_check_branch
      %36 = sbr.rel (0) target = $region17
    $region16: #{ff_model_forward.1} parent=1 // pred_region
      %37 = dma.done [#allocation3], 128
    $region17: #{ff_model_forward.1} parent=1 // pred_fallthru
      _
    // Predicated region
    $region18: #{ff_model_forward.1} parent=1 // pred_check
      _
    $region19: #{ff_model_forward.1} parent=1 // pred_check_branch
      %39 = sbr.rel (0) target = $region21
    $region20: #{ff_model_forward.1} parent=1 // pred_region
      %40 = dma.done [#allocation6], 3072
    $region21: #{ff_model_forward.1} parent=1 // pred_fallthru
      _
    %v42 = vld [vmem:[#allocation2] sm:$0xff]
    %v43 = vld [vmem:[#allocation5] sm:$0xf]
    %v44 = vld [vmem:[#allocation5 + $0x4] sm:$0xf]
    %v45 = vld [vmem:[#allocation5 + $0x8] sm:$0xf]
    %v46 = vld [vmem:[#allocation5 + $0xc] sm:$0xf]
    %v47 = vld [vmem:[%s2] sm:$0x1]
    %v48 = vpack.c.bf16 %v42, %v42
    %v50 = vlaneseq
    %v51 = vshrl.u32 %v50, 7
    %v52 = vsub.s32 0, %v51
    %v53 = vrot.slane %v47, %v52
    %v59 = vunpack.c.l.b16 %v43
    %v60 = vunpack.c.l.b16 %v44
    %v61 = vunpack.c.l.b16 %v45
    %v62 = vunpack.c.l.b16 %v46
    %v63 = vpack.c.b16 %v60, %v59
    %v64 = vpack.c.b16 %v62, %v61
    %vm67 = vcmask 261120
    %v69 = vsel %vm67, %v48, 0
    %71 = vmatprep.subr.bf16.mxu0 0
    %72 = vmatpush1.bf16.msra.mxu0 %v63
    %73 = vmatprep.subr.bf16.mxu0 0
    %74 = vmatpush1.bf16.msra.mxu0 %v64
    %75 = vmatprep.subr.bf16.mxu0 0
    %76 = vmatpush1.bf16.msra.mxu0 0
    %77 = vmatprep.subr.bf16.mxu0 0
    %78 = vmatpush1.bf16.msra.mxu0 0
    %79 = vmatprep.subr.bf16.mxu0 0
    %80 = vmatpush1.bf16.msra.mxu0 0
    %81 = vmatprep.subr.bf16.mxu0 0
    %82 = vmatpush1.bf16.msra.mxu0 0
    %83 = vmatprep.subr.bf16.mxu0 0
    %84 = vmatpush1.bf16.msra.mxu0 0
    %85 = vmatprep.subr.bf16.mxu0 0
    %86 = vmatpush1.bf16.msra.mxu0 0
    %87 = vmatprep.subr.bf16.mxu0 0
    %88 = vmatpush1.bf16.msra.mxu0 0
    %89 = vmatprep.subr.bf16.mxu0 0
    %90 = vmatpush1.bf16.msra.mxu0 0
    %91 = vmatprep.subr.bf16.mxu0 0
    %92 = vmatpush1.bf16.msra.mxu0 0
    %93 = vmatprep.subr.bf16.mxu0 0
    %94 = vmatpush1.bf16.msra.mxu0 0
    %95 = vmatprep.subr.bf16.mxu0 0
    %96 = vmatpush1.bf16.msra.mxu0 0
    %97 = vmatprep.subr.bf16.mxu0 0
    %98 = vmatpush1.bf16.msra.mxu0 0
    %99 = vmatprep.subr.bf16.mxu0 0
    %100 = vmatpush1.bf16.msra.mxu0 0
    %101 = vmatprep.subr.bf16.mxu0 0
    %102 = vmatpush1.bf16.msra.mxu0 0
    %103 = vmatprep.mubr.bf16.mxu0 0
    %104 = vmatmul.mubr.bf16.gmra.mrb[0].mxu0 %v69
    %v105 = vpop.f32.mrb[0].mxu0
    %v106 = vadd.f32 %v53, %v105
    %v107 = vpop.f32.mrb[0].mxu0
    %v108 = vpop.f32.mrb[0].mxu0
    %v109 = vpop.f32.mrb[0].mxu0
    %110 = vdwg.mxu0
    %v111 = vmax.f32 %v106, 0.0
    %s112 = scalar_lea.vmem [#allocation5], 64
    %v113 = vld [vmem:[%s112] sm:$0xf]
    %v114 = vld [vmem:[%s112 + $0x4] sm:$0xf]
    %v115 = vld [vmem:[%s112 + $0x8] sm:$0xf]
    %v116 = vld [vmem:[%s112 + $0xc] sm:$0xf]
    %v117 = vld [vmem:[%s112 + $0x10] sm:$0xf]
    %v118 = vld [vmem:[%s112 + $0x14] sm:$0xf]
    %v119 = vld [vmem:[%s112 + $0x18] sm:$0xf]
    %v120 = vld [vmem:[%s112 + $0x1c] sm:$0xf]
    %v121 = vld [vmem:[%s112 + $0x20] sm:$0xf]
    %v122 = vld [vmem:[%s112 + $0x24] sm:$0xf]
    %v123 = vld [vmem:[%s112 + $0x28] sm:$0xf]
    %v124 = vld [vmem:[%s112 + $0x2c] sm:$0xf]
    %v125 = vld [vmem:[%s112 + $0x30] sm:$0xf]
    %v126 = vld [vmem:[%s112 + $0x34] sm:$0xf]
    %v127 = vld [vmem:[%s112 + $0x38] sm:$0xf]
    %v128 = vld [vmem:[%s112 + $0x3c] sm:$0xf]
    %s129 = scalar_lea.vmem %s2, 1
    %v130 = vld [vmem:[%s129] sm:$0x1]
    %v131 = vpack.c.bf16 %v111, %v111
    %v133 = vlaneseq
    %v134 = vshrl.u32 %v133, 7
    %v135 = vsub.s32 0, %v134
    %v136 = vrot.slane %v130, %v135
    %v154 = vunpack.c.l.b16 %v113
    %v155 = vunpack.c.l.b16 %v114
    %v156 = vunpack.c.l.b16 %v115
    %v157 = vunpack.c.l.b16 %v116
    %v158 = vunpack.c.l.b16 %v117
    %v159 = vunpack.c.l.b16 %v118
    %v160 = vunpack.c.l.b16 %v119
    %v161 = vunpack.c.l.b16 %v120
    %v162 = vunpack.c.l.b16 %v121
    %v163 = vunpack.c.l.b16 %v122
    %v164 = vunpack.c.l.b16 %v123
    %v165 = vunpack.c.l.b16 %v124
    %v166 = vunpack.c.l.b16 %v125
    %v167 = vunpack.c.l.b16 %v126
    %v168 = vunpack.c.l.b16 %v127
    %v169 = vunpack.c.l.b16 %v128
    %v170 = vpack.c.b16 %v155, %v154
    %v171 = vpack.c.b16 %v157, %v156
    %v172 = vpack.c.b16 %v159, %v158
    %v173 = vpack.c.b16 %v161, %v160
    %v174 = vpack.c.b16 %v163, %v162
    %v175 = vpack.c.b16 %v165, %v164
    %v176 = vpack.c.b16 %v167, %v166
    %v177 = vpack.c.b16 %v169, %v168
    %186 = vmatprep.subr.bf16.mxu0 0
    %187 = vmatpush1.bf16.msra.mxu0 %v170
    %188 = vmatprep.subr.bf16.mxu0 0
    %189 = vmatpush1.bf16.msra.mxu0 %v171
    %190 = vmatprep.subr.bf16.mxu0 0
    %191 = vmatpush1.bf16.msra.mxu0 %v172
    %192 = vmatprep.subr.bf16.mxu0 0
    %193 = vmatpush1.bf16.msra.mxu0 %v173
    %194 = vmatprep.subr.bf16.mxu0 0
    %195 = vmatpush1.bf16.msra.mxu0 %v174
    %196 = vmatprep.subr.bf16.mxu0 0
    %197 = vmatpush1.bf16.msra.mxu0 %v175
    %198 = vmatprep.subr.bf16.mxu0 0
    %199 = vmatpush1.bf16.msra.mxu0 %v176
    %200 = vmatprep.subr.bf16.mxu0 0
    %201 = vmatpush1.bf16.msra.mxu0 %v177
    %202 = vmatprep.subr.bf16.mxu0 0
    %203 = vmatpush1.bf16.msra.mxu0 0
    %204 = vmatprep.subr.bf16.mxu0 0
    %205 = vmatpush1.bf16.msra.mxu0 0
    %206 = vmatprep.subr.bf16.mxu0 0
    %207 = vmatpush1.bf16.msra.mxu0 0
    %208 = vmatprep.subr.bf16.mxu0 0
    %209 = vmatpush1.bf16.msra.mxu0 0
    %210 = vmatprep.subr.bf16.mxu0 0
    %211 = vmatpush1.bf16.msra.mxu0 0
    %212 = vmatprep.subr.bf16.mxu0 0
    %213 = vmatpush1.bf16.msra.mxu0 0
    %214 = vmatprep.subr.bf16.mxu0 0
    %215 = vmatpush1.bf16.msra.mxu0 0
    %216 = vmatprep.subr.bf16.mxu0 0
    %217 = vmatpush1.bf16.msra.mxu0 0
    %218 = vmatprep.mubr.bf16.mxu0 0
    %219 = vmatmul.mubr.bf16.gmra.mrb[0].mxu0 %v131
    %v220 = vpop.f32.mrb[0].mxu0
    %v221 = vadd.f32 %v136, %v220
    %v222 = vpop.f32.mrb[0].mxu0
    %v223 = vpop.f32.mrb[0].mxu0
    %v224 = vpop.f32.mrb[0].mxu0
    %225 = vdwg.mxu0
    %v226 = vmax.f32 %v221, 0.0
    %s227 = scalar_lea.vmem [#allocation5], 128
    %v228 = vld [vmem:[%s227] sm:$0xf]
    %v229 = vld [vmem:[%s227 + $0x4] sm:$0xf]
    %v230 = vld [vmem:[%s227 + $0x8] sm:$0xf]
    %v231 = vld [vmem:[%s227 + $0xc] sm:$0xf]
    %v232 = vld [vmem:[%s227 + $0x10] sm:$0xf]
    %v233 = vld [vmem:[%s227 + $0x14] sm:$0xf]
    %v234 = vld [vmem:[%s227 + $0x18] sm:$0xf]
    %v235 = vld [vmem:[%s227 + $0x1c] sm:$0xf]
    %v236 = vld [vmem:[%s227 + $0x20] sm:$0xf]
    %v237 = vld [vmem:[%s227 + $0x24] sm:$0xf]
    %v238 = vld [vmem:[%s227 + $0x28] sm:$0xf]
    %v239 = vld [vmem:[%s227 + $0x2c] sm:$0xf]
    %v240 = vld [vmem:[%s227 + $0x30] sm:$0xf]
    %v241 = vld [vmem:[%s227 + $0x34] sm:$0xf]
    %v242 = vld [vmem:[%s227 + $0x38] sm:$0xf]
    %v243 = vld [vmem:[%s227 + $0x3c] sm:$0xf]
    %s244 = scalar_lea.vmem %s2, 2
    %v245 = vld [vmem:[%s244] sm:$0x1]
    %v246 = vpack.c.bf16 %v226, %v226
    %v248 = vlaneseq
    %v249 = vshrl.u32 %v248, 7
    %v250 = vsub.s32 0, %v249
    %v251 = vrot.slane %v245, %v250
    %v269 = vunpack.c.l.b16 %v228
    %v270 = vunpack.c.l.b16 %v229
    %v271 = vunpack.c.l.b16 %v230
    %v272 = vunpack.c.l.b16 %v231
    %v273 = vunpack.c.l.b16 %v232
    %v274 = vunpack.c.l.b16 %v233
    %v275 = vunpack.c.l.b16 %v234
    %v276 = vunpack.c.l.b16 %v235
    %v277 = vunpack.c.l.b16 %v236
    %v278 = vunpack.c.l.b16 %v237
    %v279 = vunpack.c.l.b16 %v238
    %v280 = vunpack.c.l.b16 %v239
    %v281 = vunpack.c.l.b16 %v240
    %v282 = vunpack.c.l.b16 %v241
    %v283 = vunpack.c.l.b16 %v242
    %v284 = vunpack.c.l.b16 %v243
    %v285 = vpack.c.b16 %v270, %v269
    %v286 = vpack.c.b16 %v272, %v271
    %v287 = vpack.c.b16 %v274, %v273
    %v288 = vpack.c.b16 %v276, %v275
    %v289 = vpack.c.b16 %v278, %v277
    %v290 = vpack.c.b16 %v280, %v279
    %v291 = vpack.c.b16 %v282, %v281
    %v292 = vpack.c.b16 %v284, %v283
    %301 = vmatprep.subr.bf16.mxu0 0
    %302 = vmatpush1.bf16.msra.mxu0 %v285
    %303 = vmatprep.subr.bf16.mxu0 0
    %304 = vmatpush1.bf16.msra.mxu0 %v286
    %305 = vmatprep.subr.bf16.mxu0 0
    %306 = vmatpush1.bf16.msra.mxu0 %v287
    %307 = vmatprep.subr.bf16.mxu0 0
    %308 = vmatpush1.bf16.msra.mxu0 %v288
    %309 = vmatprep.subr.bf16.mxu0 0
    %310 = vmatpush1.bf16.msra.mxu0 %v289
    %311 = vmatprep.subr.bf16.mxu0 0
    %312 = vmatpush1.bf16.msra.mxu0 %v290
    %313 = vmatprep.subr.bf16.mxu0 0
    %314 = vmatpush1.bf16.msra.mxu0 %v291
    %315 = vmatprep.subr.bf16.mxu0 0
    %316 = vmatpush1.bf16.msra.mxu0 %v292
    %317 = vmatprep.subr.bf16.mxu0 0
    %318 = vmatpush1.bf16.msra.mxu0 0
    %319 = vmatprep.subr.bf16.mxu0 0
    %320 = vmatpush1.bf16.msra.mxu0 0
    %321 = vmatprep.subr.bf16.mxu0 0
    %322 = vmatpush1.bf16.msra.mxu0 0
    %323 = vmatprep.subr.bf16.mxu0 0
    %324 = vmatpush1.bf16.msra.mxu0 0
    %325 = vmatprep.subr.bf16.mxu0 0
    %326 = vmatpush1.bf16.msra.mxu0 0
    %327 = vmatprep.subr.bf16.mxu0 0
    %328 = vmatpush1.bf16.msra.mxu0 0
    %329 = vmatprep.subr.bf16.mxu0 0
    %330 = vmatpush1.bf16.msra.mxu0 0
    %331 = vmatprep.subr.bf16.mxu0 0
    %332 = vmatpush1.bf16.msra.mxu0 0
    %333 = vmatprep.mubr.bf16.mxu0 0
    %334 = vmatmul.mubr.bf16.gmra.mrb[0].mxu0 %v246
    %v335 = vpop.f32.mrb[0].mxu0
    %v336 = vadd.f32 %v251, %v335
    %v337 = vpop.f32.mrb[0].mxu0
    %v338 = vpop.f32.mrb[0].mxu0
    %v339 = vpop.f32.mrb[0].mxu0
    %340 = vdwg.mxu0
    %v341 = vmax.f32 %v336, 0.0
    %v342 = vlaneseq
    %v343 = vand.u32 %v342, 127
    %vm344 = vcmp.lt.s32.totalorder %v343, 16
    %v345 = vsel %vm344, %v341, -inf
    %346 = vmax.xlane.f32.xlu0 %v345
    %v347 = vpop.xlane.xlu0 %346
    %v348 = vsub.f32 %v345, %v347
    %v349 = vmul.f32 %v348, 1.442695
    %v350 = vpow.pop %v349
    %351 = vadd.xlane.f32.xlu0 %v350
    %v352 = vpop.xlane.xlu0 %351
    %v353 = vlog2.pop %v352
    %v354 = vmul.f32 %v353, 0.6931472
    %v355 = vsub.f32 %v348, %v354
    %vm356 = vcmask 130048
    %357 = vst.msk [vmem:[#allocation7] sm:$0xff] %vm356, %v355
    // Predicated region
    $region22: #{ff_model_forward.1} parent=1 // pred_check
      _
    $region23: #{ff_model_forward.1} parent=1 // pred_check_branch
      %359 = sbr.rel (0) target = $region25
    $region24: #{ff_model_forward.1} parent=1 // pred_region
      %s361 = ssub.s32 128, 128
      %362 = vsyncadd [#allocation4], %s361
      %s364 = sshll.u32 [#allocation7], 4
      %s365 = int_to_ptr.vmem [resolvable:$true] %s364
      %367 = dma.vmem_to_hbm [thread:$0]  %s365, 128, %s3, [#allocation4]
    $region25: #{ff_model_forward.1} parent=1 // pred_fallthru
      _
    // Predicated region
    $region26: #{ff_model_forward.1} parent=1 // pred_check
      _
    $region27: #{ff_model_forward.1} parent=1 // pred_check_branch
      %369 = sbr.rel (0) target = $region29
    $region28: #{ff_model_forward.1} parent=1 // pred_region
      %370 = dma.done [#allocation4], 128
    $region29: #{ff_model_forward.1} parent=1 // pred_fallthru
      _
    %371 = vsyncpa [#allocation3], 1
    %372 = vsyncpa [#allocation6], 1
    %373 = vsyncpa [#allocation4], 1

</llo_original>
